<compile_context>
chip_gen: v5e
topology: v5e:2x2
jax: 0.10.0
libtpu: 0.0.40
codegen_flags: <defaults>
</compile_context>

<pallas_src>
import functools
import math

import jax
import jax.numpy as jnp
from jax.experimental import pallas as pl
from jax.experimental.pallas import tpu as pltpu

_INV_SQRT2 = 1.0 / math.sqrt(2.0)


def _round_up(x, m):
    return ((x + m - 1) // m) * m


def _dot_nt(a, b):
    # (m, k) x (n, k) -> (m, n): contract the shared trailing feature axis
    # (same NT contraction flash-attention's 'bqd,bkd->bqk' einsum uses).
    return jax.lax.dot_general(
        a, b, (((1,), (1,)), ((), ())), preferred_element_type=jnp.float32)


def actor_kernel(x_ref, w1_ref, b1_ref, w2_ref, b2_ref, w3_ref, b3_ref, out_ref):
    """Fused MLP on one batch tile.

    x_ref arrives batch-major (tb, d_in) f32 straight from HBM (no wrapper prep
    pass).  All dots keep activations feature-major (features, tb): batch on the
    128-lane axis -> lane-dense VPU/EUP work and unmasked full-tile output stores.
    """
    x = x_ref[...].astype(jnp.bfloat16)                               # (tb, d_in)

    # fc1 + ReLU   (NT: contract d_in of w1 with d_in of x -> (fc1, tb))
    h1 = _dot_nt(w1_ref[...], x)                                      # (fc1, tb) f32
    h1 = jnp.maximum(h1 + b1_ref[...], 0.0)

    # fc2 + ReLU
    h2 = jnp.dot(w2_ref[...], h1.astype(jnp.bfloat16),
                 preferred_element_type=jnp.float32)                  # (fc2, tb) f32
    h2 = jnp.maximum(h2 + b2_ref[...], 0.0)

    # mu head (padded to 8 rows) + (1/sqrt(2)) * tanh epilogue, f32 throughout.
    mu = jnp.dot(w3_ref[...], h2.astype(jnp.bfloat16),
                 preferred_element_type=jnp.float32)                  # (8, tb) f32
    mu = mu + b3_ref[...]
    out_ref[...] = (_INV_SQRT2 * jnp.tanh(mu)).astype(out_ref.dtype)


@functools.partial(jax.jit, static_argnames=("block_b", "feature_major_out"))
def actor_forward(state, params, *, block_b=4096, feature_major_out=False):
    """state: (B, input_dims) f32; params in torch layout (w:(out,in), b:(out,1)).

    Returns (B, n_actions) f32 (matching ActorNetwork.forward), or (n_actions, B)
    if feature_major_out=True (skips the wrapper transpose).
    """
    B, d_in = state.shape
    fc1 = params["w1"].shape[0]
    fc2 = params["w2"].shape[0]
    n_actions = params["w3"].shape[0]

    # Batch geometry:
    #   * pad the batch only to the 128-lane width (waste < 128 rows, never ~tb)
    #   * tb targets ~half the padded batch (so v7x's 2 TCs both get a tile when
    #     possible), capped at block_b, and never exceeds b_pad
    #   * the grid uses cdiv; a partial last tile is masked by Pallas
    b_pad = _round_up(B, 128)
    tb = max(128, min(block_b, _round_up(pl.cdiv(b_pad, 2), 128)))
    tb = min(tb, b_pad)
    grid = (pl.cdiv(b_pad, tb),)

    a_pad = _round_up(n_actions, 8)   # full-sublane output rows -> unmasked vst

    # State stays f32 and batch-major: only a tiny zero-pad (< 128 rows) when the
    # batch is ragged; no cast, no transpose, no tb-sized padding.
    x_in = state.astype(jnp.float32)
    if B != b_pad:
        x_in = jnp.pad(x_in, ((0, b_pad - B), (0, 0)))

    # Weights in bf16 (tiny, one-time); biases f32; mu head zero-padded to 8 rows.
    w1 = params["w1"].astype(jnp.bfloat16)
    w2 = params["w2"].astype(jnp.bfloat16)
    w3 = jnp.zeros((a_pad, fc2), jnp.bfloat16).at[:n_actions].set(
        params["w3"].astype(jnp.bfloat16))
    b1 = params["b1"].astype(jnp.float32)
    b2 = params["b2"].astype(jnp.float32)
    b3 = jnp.zeros((a_pad, 1), jnp.float32).at[:n_actions].set(
        params["b3"].astype(jnp.float32))

    # Weights/biases: full-array blocks, constant index_map -> fetched once,
    # VMEM-resident across all batch tiles.
    def full(a):
        return pl.BlockSpec(a.shape, lambda i: (0,) * a.ndim)

    flops = 2 * b_pad * (d_in * fc1 + fc1 * fc2 + fc2 * a_pad)
    bytes_accessed = (b_pad * d_in * 4
                      + (w1.size + w2.size + w3.size) * 2
                      + (b1.size + b2.size + b3.size) * 4
                      + a_pad * b_pad * 4)

    out_t = pl.pallas_call(
        actor_kernel,
        out_shape=jax.ShapeDtypeStruct((a_pad, b_pad), jnp.float32),
        grid_spec=pl.GridSpec(
            grid=grid,
            in_specs=[
                pl.BlockSpec((tb, d_in), lambda i: (i, 0)),   # batch-major state
                full(w1), full(b1),
                full(w2), full(b2),
                full(w3), full(b3),
            ],
            out_specs=pl.BlockSpec((a_pad, tb), lambda i: (0, i)),
        ),
        compiler_params=pltpu.CompilerParams(
            dimension_semantics=("parallel",),   # v7x: shard batch tiles across 2 TCs
        ),
        cost_estimate=pl.CostEstimate(
            flops=flops,
            transcendentals=a_pad * b_pad,
            bytes_accessed=bytes_accessed),
    )(x_in, w1, b1, w2, b2, w3, b3)

    if feature_major_out:
        return out_t[:n_actions, :B]
    return out_t[:n_actions, :B].T


def init_params(key, input_dims, fc1_dims, fc2_dims, n_actions):
    """torch.nn.Linear default init (U[-1/sqrt(fan_in), +]), torch (out, in) layout."""
    ks = jax.random.split(key, 6)

    def linear(kw, kb, fan_in, fan_out):
        bound = 1.0 / math.sqrt(fan_in)
        w = jax.random.uniform(kw, (fan_out, fan_in), jnp.float32, -bound, bound)
        b = jax.random.uniform(kb, (fan_out, 1), jnp.float32, -bound, bound)
        return w, b

    w1, b1 = linear(ks[0], ks[1], input_dims, fc1_dims)
    w2, b2 = linear(ks[2], ks[3], fc1_dims, fc2_dims)
    w3, b3 = linear(ks[4], ks[5], fc2_dims, n_actions)
    return dict(w1=w1, b1=b1, w2=w2, b2=b2, w3=w3, b3=b3)


if __name__ == "__main__":
    key = jax.random.PRNGKey(0)
    k_state, k_params = jax.random.split(key)

    # NOTE: B=2 is launch-overhead dominated by construction; batch many env
    # states before entering the kernel in production (the tiling above then
    # runs near the HBM roofline and splits across v7x's two TensorCores).
    batch = 2
    input_dims, fc1_dims, fc2_dims, n_actions = 8, 32, 32, 4

    state = jax.random.normal(k_state, (batch, input_dims), jnp.float32)
    params = init_params(k_params, input_dims, fc1_dims, fc2_dims, n_actions)

    out = jax.block_until_ready(actor_forward(state, params))
    assert out.shape == (batch, n_actions)

    # Pure-JAX reference with the same bf16-stream / f32-accumulate recipe.
    xb = state.astype(jnp.bfloat16)
    w1b = params["w1"].astype(jnp.bfloat16)
    w2b = params["w2"].astype(jnp.bfloat16)
    w3b = params["w3"].astype(jnp.bfloat16)
    h1 = jnp.maximum(jnp.dot(xb, w1b.T, preferred_element_type=jnp.float32)
                     + params["b1"].T, 0.0)
    h2 = jnp.maximum(jnp.dot(h1.astype(jnp.bfloat16), w2b.T,
                             preferred_element_type=jnp.float32)
                     + params["b2"].T, 0.0)
    ref = _INV_SQRT2 * jnp.tanh(jnp.dot(h2.astype(jnp.bfloat16), w3b.T,
                                        preferred_element_type=jnp.float32)
                                + params["b3"].T)
    assert jnp.allclose(out, ref, atol=2e-3, rtol=2e-3), \
        float(jnp.max(jnp.abs(out - ref)))

    print("KERNEL_OK")
</pallas_src>

<mosaic_0001>
module attributes {stable_mosaic.version = 11 : i64} {
  func.func @actor_kernel(%arg0: i32, %arg1: memref<128x8xf32, #tpu.memory_space<vmem>>, %arg2: memref<32x8xbf16, #tpu.memory_space<vmem>>, %arg3: memref<32x1xf32, #tpu.memory_space<vmem>>, %arg4: memref<32x32xbf16, #tpu.memory_space<vmem>>, %arg5: memref<32x1xf32, #tpu.memory_space<vmem>>, %arg6: memref<8x32xbf16, #tpu.memory_space<vmem>>, %arg7: memref<8x1xf32, #tpu.memory_space<vmem>>, %arg8: memref<8x128xf32, #tpu.memory_space<vmem>>) attributes {dimension_semantics = [#tpu.dimension_semantics<parallel>], iteration_bounds = array<i64: 1>, scalar_prefetch = 0 : i64, scratch_operands = 0 : i64, tpu.core_type = #tpu.core_type<tc>, window_params = [{transform_indices = @transform_0, window_bounds = array<i64: 128, 8>}, {pipeline_mode = #tpu.pipeline_mode<synchronous>, transform_indices = @transform_1, window_bounds = array<i64: 32, 8>}, {pipeline_mode = #tpu.pipeline_mode<synchronous>, transform_indices = @transform_2, window_bounds = array<i64: 32, 1>}, {pipeline_mode = #tpu.pipeline_mode<synchronous>, transform_indices = @transform_3, window_bounds = array<i64: 32, 32>}, {pipeline_mode = #tpu.pipeline_mode<synchronous>, transform_indices = @transform_4, window_bounds = array<i64: 32, 1>}, {pipeline_mode = #tpu.pipeline_mode<synchronous>, transform_indices = @transform_5, window_bounds = array<i64: 8, 32>}, {pipeline_mode = #tpu.pipeline_mode<synchronous>, transform_indices = @transform_6, window_bounds = array<i64: 8, 1>}, {transform_indices = @transform_7, window_bounds = array<i64: 8, 128>}]} {
    %c0 = arith.constant 0 : index
    %c0_0 = arith.constant 0 : index
    %0 = vector.load %arg1[%c0, %c0_0] : memref<128x8xf32, #tpu.memory_space<vmem>>, vector<128x8xf32>
    %1 = arith.truncf %0 : vector<128x8xf32> to vector<128x8xbf16>
    %c0_1 = arith.constant 0 : index
    %c0_2 = arith.constant 0 : index
    %2 = vector.load %arg2[%c0_1, %c0_2] : memref<32x8xbf16, #tpu.memory_space<vmem>>, vector<32x8xbf16>
    %cst = arith.constant dense<0.000000e+00> : vector<32x128xf32>
    %3 = tpu.matmul %2, %1, %cst {dimension_numbers = #tpu.dot_dimension_numbers<[1], [1], [0], [0], [0, 0, 1, 0], [], []>} : vector<32x8xbf16>, vector<128x8xbf16>, vector<32x128xf32> -> vector<32x128xf32>
    %c0_3 = arith.constant 0 : index
    %c0_4 = arith.constant 0 : index
    %4 = vector.load %arg3[%c0_3, %c0_4] : memref<32x1xf32, #tpu.memory_space<vmem>>, vector<32x1xf32>
    %5 = vector.broadcast %4 : vector<32x1xf32> to vector<32x128xf32>
    %6 = arith.addf %3, %5 : vector<32x128xf32>
    %cst_5 = arith.constant 0.000000e+00 : f32
    %7 = vector.broadcast %cst_5 : f32 to vector<32x128xf32>
    %8 = arith.maximumf %6, %7 : vector<32x128xf32>
    %c0_6 = arith.constant 0 : index
    %c0_7 = arith.constant 0 : index
    %9 = vector.load %arg4[%c0_6, %c0_7] : memref<32x32xbf16, #tpu.memory_space<vmem>>, vector<32x32xbf16>
    %10 = arith.truncf %8 : vector<32x128xf32> to vector<32x128xbf16>
    %cst_8 = arith.constant dense<0.000000e+00> : vector<32x128xf32>
    %11 = tpu.matmul %9, %10, %cst_8 {dimension_numbers = #tpu.dot_dimension_numbers<[1], [0], [0], [1], [0, 0, 1, 1], [], []>} : vector<32x32xbf16>, vector<32x128xbf16>, vector<32x128xf32> -> vector<32x128xf32>
    %c0_9 = arith.constant 0 : index
    %c0_10 = arith.constant 0 : index
    %12 = vector.load %arg5[%c0_9, %c0_10] : memref<32x1xf32, #tpu.memory_space<vmem>>, vector<32x1xf32>
    %13 = vector.broadcast %12 : vector<32x1xf32> to vector<32x128xf32>
    %14 = arith.addf %11, %13 : vector<32x128xf32>
    %cst_11 = arith.constant 0.000000e+00 : f32
    %15 = vector.broadcast %cst_11 : f32 to vector<32x128xf32>
    %16 = arith.maximumf %14, %15 : vector<32x128xf32>
    %c0_12 = arith.constant 0 : index
    %c0_13 = arith.constant 0 : index
    %17 = vector.load %arg6[%c0_12, %c0_13] : memref<8x32xbf16, #tpu.memory_space<vmem>>, vector<8x32xbf16>
    %18 = arith.truncf %16 : vector<32x128xf32> to vector<32x128xbf16>
    %cst_14 = arith.constant dense<0.000000e+00> : vector<8x128xf32>
    %19 = tpu.matmul %17, %18, %cst_14 {dimension_numbers = #tpu.dot_dimension_numbers<[1], [0], [0], [1], [0, 0, 1, 1], [], []>} : vector<8x32xbf16>, vector<32x128xbf16>, vector<8x128xf32> -> vector<8x128xf32>
    %c0_15 = arith.constant 0 : index
    %c0_16 = arith.constant 0 : index
    %20 = vector.load %arg7[%c0_15, %c0_16] : memref<8x1xf32, #tpu.memory_space<vmem>>, vector<8x1xf32>
    %21 = vector.broadcast %20 : vector<8x1xf32> to vector<8x128xf32>
    %22 = arith.addf %19, %21 : vector<8x128xf32>
    %23 = math.tanh %22 : vector<8x128xf32>
    %cst_17 = arith.constant 0.707106769 : f32
    %24 = vector.broadcast %cst_17 : f32 to vector<8x128xf32>
    %25 = arith.mulf %24, %23 : vector<8x128xf32>
    %c0_18 = arith.constant 0 : index
    %c0_19 = arith.constant 0 : index
    %26 = vector.load %arg8[%c0_18, %c0_19] : memref<8x128xf32, #tpu.memory_space<vmem>>, vector<8x128xf32>
    tpu.vector_store %arg8[%c0_18, %c0_19], %25 {strides = array<i32>} : memref<8x128xf32, #tpu.memory_space<vmem>>, vector<8x128xf32>,
    return
  }
  func.func @transform_0(%arg0: i32) -> (i32, i32) {
    %c0_i32 = arith.constant 0 : i32
    %c0_i32_0 = arith.constant 0 : i32
    return %arg0, %c0_i32 : i32, i32
  }
  func.func @transform_1(%arg0: i32) -> (i32, i32) {
    %c0_i32 = arith.constant 0 : i32
    %c0_i32_0 = arith.constant 0 : i32
    %c0_i32_1 = arith.constant 0 : i32
    return %c0_i32, %c0_i32_0 : i32, i32
  }
  func.func @transform_2(%arg0: i32) -> (i32, i32) {
    %c0_i32 = arith.constant 0 : i32
    %c0_i32_0 = arith.constant 0 : i32
    %c0_i32_1 = arith.constant 0 : i32
    return %c0_i32, %c0_i32_0 : i32, i32
  }
  func.func @transform_3(%arg0: i32) -> (i32, i32) {
    %c0_i32 = arith.constant 0 : i32
    %c0_i32_0 = arith.constant 0 : i32
    %c0_i32_1 = arith.constant 0 : i32
    return %c0_i32, %c0_i32_0 : i32, i32
  }
  func.func @transform_4(%arg0: i32) -> (i32, i32) {
    %c0_i32 = arith.constant 0 : i32
    %c0_i32_0 = arith.constant 0 : i32
    %c0_i32_1 = arith.constant 0 : i32
    return %c0_i32, %c0_i32_0 : i32, i32
  }
  func.func @transform_5(%arg0: i32) -> (i32, i32) {
    %c0_i32 = arith.constant 0 : i32
    %c0_i32_0 = arith.constant 0 : i32
    %c0_i32_1 = arith.constant 0 : i32
    return %c0_i32, %c0_i32_0 : i32, i32
  }
  func.func @transform_6(%arg0: i32) -> (i32, i32) {
    %c0_i32 = arith.constant 0 : i32
    %c0_i32_0 = arith.constant 0 : i32
    %c0_i32_1 = arith.constant 0 : i32
    return %c0_i32, %c0_i32_0 : i32, i32
  }
  func.func @transform_7(%arg0: i32) -> (i32, i32) {
    %c0_i32 = arith.constant 0 : i32
    %c0_i32_0 = arith.constant 0 : i32
    return %c0_i32, %arg0 : i32, i32
  }
}

</mosaic_0001>

<llo_original>
// kernel: actor_forward.1
$region0: #{actor_forward.1}
  #allocation0 [shape = 'u32[]', space=smem, size = 0x4, offset = 0x4, fixed_abs, tag = 'smem constant byte address 0x4 - core index']
  #allocation1 [shape = 'u32[72,128]{1,0:T(1,128)}', space=vmem, size = 0x9000, scoped, tag = 'internal scratch']
  %s0 = inlined_call_operand.vmem [shape: f32[128,8], index: 0, kind: input, shape index: {}]
  %s1 = inlined_call_operand.vmem [shape: bf16[32,8], index: 1, kind: input, shape index: {}]
  %s2 = inlined_call_operand.vmem [shape: f32[32,1], index: 2, kind: input, shape index: {}]
  %s3 = inlined_call_operand.vmem [shape: bf16[32,32], index: 3, kind: input, shape index: {}]
  %s4 = inlined_call_operand.vmem [shape: f32[32,1], index: 4, kind: input, shape index: {}]
  %s5 = inlined_call_operand.vmem [shape: bf16[8,32], index: 5, kind: input, shape index: {}]
  %s6 = inlined_call_operand.vmem [shape: f32[8,1], index: 6, kind: input, shape index: {}]
  %s7 = inlined_call_operand.vmem [shape: f32[8,128], index: 7, kind: output, shape index: {}]
  %s8 = sld [smem:[#allocation0]]
  $region38: #{actor_forward.1} parent=0
    _
  %s10 = ssub.s32 1, %s8
  %s11 = scalar_select 0, %s10, %s8
  // Predicated region
  $region2: #{actor_forward.1} parent=0 // pred_check
    _
  $region3: #{actor_forward.1} parent=0 // pred_check_branch
    %13 = sbr.rel (0) target = $region5
  $region4: #{actor_forward.1} parent=0 // pred_region
    _
  $region5: #{actor_forward.1} parent=0 // pred_fallthru
    _
  // Predicated region
  $region6: #{actor_forward.1} parent=0 // pred_check
    _
  $region7: #{actor_forward.1} parent=0 // pred_check_branch
    %15 = sbr.rel (0) target = $region9
  $region8: #{actor_forward.1} parent=0 // pred_region
    _
  $region9: #{actor_forward.1} parent=0 // pred_fallthru
    _
  // Predicated region
  $region10: #{actor_forward.1} parent=0 // pred_check
    _
  $region11: #{actor_forward.1} parent=0 // pred_check_branch
    %17 = sbr.rel (0) target = $region13
  $region12: #{actor_forward.1} parent=0 // pred_region
    _
  $region13: #{actor_forward.1} parent=0 // pred_fallthru
    _
  // Predicated region
  $region14: #{actor_forward.1} parent=0 // pred_check
    _
  $region15: #{actor_forward.1} parent=0 // pred_check_branch
    %19 = sbr.rel (0) target = $region17
  $region16: #{actor_forward.1} parent=0 // pred_region
    _
  $region17: #{actor_forward.1} parent=0 // pred_fallthru
    _
  // Predicated region
  $region18: #{actor_forward.1} parent=0 // pred_check
    _
  $region19: #{actor_forward.1} parent=0 // pred_check_branch
    %21 = sbr.rel (0) target = $region21
  $region20: #{actor_forward.1} parent=0 // pred_region
    _
  $region21: #{actor_forward.1} parent=0 // pred_fallthru
    _
  // Predicated region
  $region22: #{actor_forward.1} parent=0 // pred_check
    _
  $region23: #{actor_forward.1} parent=0 // pred_check_branch
    %23 = sbr.rel (0) target = $region25
  $region24: #{actor_forward.1} parent=0 // pred_region
    _
  $region25: #{actor_forward.1} parent=0 // pred_fallthru
    _
  // Predicated region
  $region26: #{actor_forward.1} parent=0 // pred_check
    _
  $region27: #{actor_forward.1} parent=0 // pred_check_branch
    %25 = sbr.rel (0) target = $region29
  $region28: #{actor_forward.1} parent=0 // pred_region
    _
  $region29: #{actor_forward.1} parent=0 // pred_fallthru
    _
  %v27 = vld [vmem:[%s0] sm:$0xff]
  %v28 = vld [vmem:[%s0 + $0x8] sm:$0xff]
  %v29 = vld [vmem:[%s0 + $0x10] sm:$0xff]
  %v30 = vld [vmem:[%s0 + $0x18] sm:$0xff]
  %v31 = vld [vmem:[%s0 + $0x20] sm:$0xff]
  %v32 = vld [vmem:[%s0 + $0x28] sm:$0xff]
  %v33 = vld [vmem:[%s0 + $0x30] sm:$0xff]
  %v34 = vld [vmem:[%s0 + $0x38] sm:$0xff]
  %v35 = vld [vmem:[%s0 + $0x40] sm:$0xff]
  %v36 = vld [vmem:[%s0 + $0x48] sm:$0xff]
  %v37 = vld [vmem:[%s0 + $0x50] sm:$0xff]
  %v38 = vld [vmem:[%s0 + $0x58] sm:$0xff]
  %v39 = vld [vmem:[%s0 + $0x60] sm:$0xff]
  %v40 = vld [vmem:[%s0 + $0x68] sm:$0xff]
  %v41 = vld [vmem:[%s0 + $0x70] sm:$0xff]
  %v42 = vld [vmem:[%s0 + $0x78] sm:$0xff]
  %v43 = vpack.c.bf16 %v28, %v27
  %v44 = vpack.c.bf16 %v30, %v29
  %v45 = vpack.c.bf16 %v32, %v31
  %v46 = vpack.c.bf16 %v34, %v33
  %v47 = vpack.c.bf16 %v36, %v35
  %v48 = vpack.c.bf16 %v38, %v37
  %v49 = vpack.c.bf16 %v40, %v39
  %v50 = vpack.c.bf16 %v42, %v41
  %v51 = vld [vmem:[%s1] sm:$0xf]
  %v52 = vld [vmem:[%s1 + $0x4] sm:$0xf]
  %v53 = vld [vmem:[%s1 + $0x8] sm:$0xf]
  %v54 = vld [vmem:[%s1 + $0xc] sm:$0xf]
  %v55 = vld [vmem:[%s2] sm:$0xff]
  %v56 = vld [vmem:[%s2 + $0x8] sm:$0xff]
  %v57 = vld [vmem:[%s2 + $0x10] sm:$0xff]
  %v58 = vld [vmem:[%s2 + $0x18] sm:$0xff]
  %60 = vset.pattern.permute.xlu0 0
  %61 = vperm.xlu0 %60, %v55
  %v62 = vpop.permute.xlu0 %61
  %65 = vset.pattern.permute.xlu0 0
  %66 = vperm.xlu0 %65, %v56
  %v67 = vpop.permute.xlu0 %66
  %70 = vset.pattern.permute.xlu0 0
  %71 = vperm.xlu0 %70, %v57
  %v72 = vpop.permute.xlu0 %71
  %75 = vset.pattern.permute.xlu0 0
  %76 = vperm.xlu0 %75, %v58
  %v77 = vpop.permute.xlu0 %76
  %v83 = vunpack.c.l.b16 %v51
  %v84 = vunpack.c.l.b16 %v52
  %v85 = vunpack.c.l.b16 %v53
  %v86 = vunpack.c.l.b16 %v54
  %v87 = vpack.c.b16 %v84, %v83
  %v88 = vpack.c.b16 %v86, %v85
  %vm89 = vcmask 64512
  %v91 = vsel %vm89, %v87, 0
  %v94 = vsel %vm89, %v88, 0
  %v97 = vsel %vm89, %v43, 0
  %v100 = vsel %vm89, %v44, 0
  %v103 = vsel %vm89, %v45, 0
  %v106 = vsel %vm89, %v46, 0
  %v109 = vsel %vm89, %v47, 0
  %v112 = vsel %vm89, %v48, 0
  %v115 = vsel %vm89, %v49, 0
  %v118 = vsel %vm89, %v50, 0
  %120 = vmatpush.bf16.xpose.msra.mxu0 %v118
  %121 = vmatpush.bf16.xpose.msra.mxu0 %v115
  %122 = vmatpush.bf16.xpose.msra.mxu0 %v112
  %123 = vmatpush.bf16.xpose.msra.mxu0 %v109
  %124 = vmatpush.bf16.xpose.msra.mxu0 %v106
  %125 = vmatpush.bf16.xpose.msra.mxu0 %v103
  %126 = vmatpush.bf16.xpose.msra.mxu0 %v100
  %127 = vmatpush.bf16.xpose.msra.mxu0 %v97
  %128 = vmatmul.bf16.gmra.mxu0 %v91
  %v129 = vpop.f32.mrf.mxu0
  %v130 = vadd.f32 %v62, %v129
  %v131 = vpop.f32.mrf.mxu0
  %v132 = vadd.f32 %v67, %v131
  %133 = vmatmul.bf16.gmra.mxu0 %v94
  %v134 = vpop.f32.mrf.mxu0
  %v135 = vadd.f32 %v72, %v134
  %v136 = vpop.f32.mrf.mxu0
  %v137 = vadd.f32 %v77, %v136
  %138 = vdwg.mxu0
  %v139 = vmax.f32 %v130, 0.0
  %v140 = vmax.f32 %v132, 0.0
  %v141 = vmax.f32 %v135, 0.0
  %v142 = vmax.f32 %v137, 0.0
  %v143 = vld [vmem:[%s3] sm:$0xf]
  %v144 = vld [vmem:[%s3 + $0x4] sm:$0xf]
  %v145 = vld [vmem:[%s3 + $0x8] sm:$0xf]
  %v146 = vld [vmem:[%s3 + $0xc] sm:$0xf]
  %v147 = vpack.c.bf16 %v140, %v139
  %v148 = vpack.c.bf16 %v142, %v141
  %v149 = vld [vmem:[%s4] sm:$0xff]
  %v150 = vld [vmem:[%s4 + $0x8] sm:$0xff]
  %v151 = vld [vmem:[%s4 + $0x10] sm:$0xff]
  %v152 = vld [vmem:[%s4 + $0x18] sm:$0xff]
  %154 = vset.pattern.permute.xlu0 0
  %155 = vperm.xlu0 %154, %v149
  %v156 = vpop.permute.xlu0 %155
  %159 = vset.pattern.permute.xlu0 0
  %160 = vperm.xlu0 %159, %v150
  %v161 = vpop.permute.xlu0 %160
  %164 = vset.pattern.permute.xlu0 0
  %165 = vperm.xlu0 %164, %v151
  %v166 = vpop.permute.xlu0 %165
  %169 = vset.pattern.permute.xlu0 0
  %170 = vperm.xlu0 %169, %v152
  %v171 = vpop.permute.xlu0 %170
  %v177 = vunpack.c.l.b16 %v143
  %v178 = vunpack.c.l.b16 %v144
  %v179 = vunpack.c.l.b16 %v145
  %v180 = vunpack.c.l.b16 %v146
  %v181 = vpack.c.b16 %v178, %v177
  %v182 = vpack.c.b16 %v180, %v179
  %vm183 = vcmask 261120
  %v185 = vsel %vm183, %v181, 0
  %v188 = vsel %vm183, %v182, 0
  %190 = vmatpush.bf16.msra.mxu0 0
  %191 = vmatpush.bf16.msra.mxu0 0
  %192 = vmatpush.bf16.msra.mxu0 0
  %193 = vmatpush.bf16.msra.mxu0 0
  %194 = vmatpush.bf16.msra.mxu0 0
  %195 = vmatpush.bf16.msra.mxu0 0
  %196 = vmatpush.bf16.msra.mxu0 %v148
  %197 = vmatpush.bf16.msra.mxu0 %v147
  %198 = vmatmul.bf16.gmra.mxu0 %v185
  %v199 = vpop.f32.mrf.mxu0
  %v200 = vadd.f32 %v156, %v199
  %v201 = vpop.f32.mrf.mxu0
  %v202 = vadd.f32 %v161, %v201
  %203 = vmatmul.bf16.gmra.mxu0 %v188
  %v204 = vpop.f32.mrf.mxu0
  %v205 = vadd.f32 %v166, %v204
  %v206 = vpop.f32.mrf.mxu0
  %v207 = vadd.f32 %v171, %v206
  %208 = vdwg.mxu0
  %v209 = vmax.f32 %v200, 0.0
  %v210 = vmax.f32 %v202, 0.0
  %v211 = vmax.f32 %v205, 0.0
  %v212 = vmax.f32 %v207, 0.0
  %v213 = vld [vmem:[%s5] sm:$0xf]
  %v214 = vpack.c.bf16 %v210, %v209
  %v215 = vpack.c.bf16 %v212, %v211
  %v216 = vld [vmem:[%s6] sm:$0xff]
  %218 = vset.pattern.permute.xlu0 0
  %219 = vperm.xlu0 %218, %v216
  %v220 = vpop.permute.xlu0 %219
  %v223 = vsel %vm183, %v213, 0
  %225 = vmatpush.bf16.msra.mxu0 0
  %226 = vmatpush.bf16.msra.mxu0 0
  %227 = vmatpush.bf16.msra.mxu0 0
  %228 = vmatpush.bf16.msra.mxu0 0
  %229 = vmatpush.bf16.msra.mxu0 0
  %230 = vmatpush.bf16.msra.mxu0 0
  %231 = vmatpush.bf16.msra.mxu0 %v215
  %232 = vmatpush.bf16.msra.mxu0 %v214
  %233 = vmatmul.bf16.gmra.mxu0 %v223
  %v234 = vpop.f32.mrf.mxu0
  %v235 = vadd.f32 %v220, %v234
  %v236 = vpop.f32.mrf.mxu0
  %237 = vdwg.mxu0
  %v238 = vtanh.pop %v235
  %v239 = vmul.f32 %v238, 0.70710677
  %240 = vst [vmem:[%s7] sm:$0xff] %v239
  // Predicated region
  $region30: #{actor_forward.1} parent=0 // pred_check
    _
  $region31: #{actor_forward.1} parent=0 // pred_check_branch
    %242 = sbr.rel (0) target = $region33
  $region32: #{actor_forward.1} parent=0 // pred_region
    _
  $region33: #{actor_forward.1} parent=0 // pred_fallthru
    _
  // Predicated region
  $region34: #{actor_forward.1} parent=0 // pred_check
    _
  $region35: #{actor_forward.1} parent=0 // pred_check_branch
    %244 = sbr.rel (0) target = $region37
  $region36: #{actor_forward.1} parent=0 // pred_region
    _
  $region37: #{actor_forward.1} parent=0 // pred_fallthru
    _

</llo_original>
